<compile_context>
chip_gen: v7x
topology: tpu7x:2x2x1
jax: 0.10.0
libtpu: 0.0.40
codegen_flags: <defaults>
</compile_context>

<pallas_src>
import functools
import math

import jax
import jax.numpy as jnp
from jax.experimental import pallas as pl
from jax.experimental.pallas import tpu as pltpu


def _round_up(x: int, m: int) -> int:
    return ((x + m - 1) // m) * m


def _cdiv(a: int, b: int) -> int:
    return -(-a // b)


# ----------------------------------------------------------------------------
# kernel
# ----------------------------------------------------------------------------
def _sac_q_kernel(n_hidden_layers, *refs):
    """refs = (state, action,
               W1_state, W1_action, b1,
               W2, b2, ..., Wn, bn,
               w_out_row, b_out,
               out_ref)

    out = w_out . ReLU(... ReLU([s,a] @ W1 + b1) ...) + b_out
    bf16 MXU inputs, f32 accumulation, f32 bias-add/ReLU, bf16 activation carry.
    """
    state_ref, action_ref = refs[0], refs[1]
    out_ref = refs[-1]
    p = refs[2:-1]

    # ---- layer 1: fused concat via row-split weights ----
    w1s_ref, w1a_ref, b1_ref = p[0], p[1], p[2]
    s = state_ref[...].astype(jnp.bfloat16)
    a = action_ref[...].astype(jnp.bfloat16)
    # TODO(synk): if layer 1 ever shows on the MXU critical path, merge these two
    # tiny-K dots into one lane-padded K dot (single MXU push/drain).
    acc = (
        jnp.dot(s, w1s_ref[...], preferred_element_type=jnp.float32)
        + jnp.dot(a, w1a_ref[...], preferred_element_type=jnp.float32)
        + b1_ref[...]
    )
    # ReLU in f32 (safe on v5e: no bf16 VPU), carry in bf16 (smaller footprint,
    # feeds the next MXU dot directly on v6e/v7x).
    h = jnp.maximum(acc, 0.0).astype(jnp.bfloat16)

    # ---- remaining hidden layers (statically unrolled) ----
    for layer in range(1, n_hidden_layers):
        w_ref = p[3 + 2 * (layer - 1)]
        b_ref = p[4 + 2 * (layer - 1)]
        acc = jnp.dot(h, w_ref[...], preferred_element_type=jnp.float32) + b_ref[...]
        h = jnp.maximum(acc, 0.0).astype(jnp.bfloat16)

    # ---- output layer (hidden -> 1) as a lane reduction ----
    wo_ref = p[-2]  # (1, hidden) f32
    bo_ref = p[-1]  # (1, 1) f32
    # Output writeback is a (TB, 1) tile; at TB >= 1024 the masked stores are
    # hidden under the MXU work, so the lane-dense-output transform is skipped.
    out_ref[...] = (
        jnp.sum(h.astype(jnp.float32) * wo_ref[...], axis=-1, keepdims=True)
        + bo_ref[...]
    ).astype(out_ref.dtype)


# ----------------------------------------------------------------------------
# wrapper
# ----------------------------------------------------------------------------
def _choose_batch_tiling(B, *, max_tile=4096, split_threshold=256):
    """Pick (padded_B, TB): TB % 16 == 0 and the tile count is 1 or an even
    number >= 2 (keeps both v7x TensorCores busy and balanced)."""
    Bp = _round_up(max(B, 1), 16)
    if Bp < split_threshold:
        return Bp, Bp  # single tile: not enough work to amortize a second step
    n_tiles = 2
    while _round_up(_cdiv(Bp, n_tiles), 16) > max_tile:
        n_tiles += 2
    TB = _round_up(_cdiv(Bp, n_tiles), 16)
    return TB * n_tiles, TB


def _vmem_budget_bytes(TB, state_dim, action_dim, hidden_dim, flat_params):
    act_in = 2 * TB * (state_dim + action_dim) * 4       # double-buffered f32 inputs
    act_out = 2 * TB * 4                                 # double-buffered f32 output
    weights = 2 * sum(int(p.size) * p.dtype.itemsize for p in flat_params)
    scratch = 6 * TB * hidden_dim * 4                    # generous f32/bf16 temporaries
    est = act_in + act_out + weights + scratch
    # headroom, clamped to a budget that is safe even on v7x (64 MiB physical)
    return int(min(max(est * 3 // 2, 16 << 20), 60 << 20))


_HAS_BUFFERED = hasattr(pl, "Buffered")


def _resident_spec(shape):
    """BlockSpec for a weight/bias that stays VMEM-resident across all tiles.
    Constant block index -> single-buffered (no point double-buffering)."""
    idx = lambda i: (0,) * len(shape)
    if _HAS_BUFFERED:
        try:
            return pl.BlockSpec(shape, idx, pipeline_mode=pl.Buffered(1))
        except TypeError:
            pass
    return pl.BlockSpec(shape, idx)


def sac_q_forward(state, action, params):
    """params: list of (W, b) pairs, W shaped (in_features, out_features);
    last pair is fc_out (hidden -> 1)."""
    B, state_dim = state.shape
    _, action_dim = action.shape
    n_hidden_layers = len(params) - 1
    hidden_dim = params[0][1].shape[0]

    # --- batch tiling (16-aligned, 1 or an even number of tiles) ---
    Bp, TB = _choose_batch_tiling(B)
    if Bp != B:
        state = jnp.pad(state, ((0, Bp - B), (0, 0)))
        action = jnp.pad(action, ((0, Bp - B), (0, 0)))
    grid = (Bp // TB,)

    # --- flatten params: bf16 weights (MXU), f32 biases / output row ---
    w1, b1 = params[0]
    flat_params = [
        w1[:state_dim].astype(jnp.bfloat16),   # W1 rows matching `state`
        w1[state_dim:].astype(jnp.bfloat16),   # W1 rows matching `action`
        b1.reshape(1, -1).astype(jnp.float32),
    ]
    for w, b in params[1:-1]:
        flat_params.append(w.astype(jnp.bfloat16))
        flat_params.append(b.reshape(1, -1).astype(jnp.float32))
    wo, bo = params[-1]
    flat_params.append(wo.reshape(1, -1).astype(jnp.float32))  # (1, hidden)
    flat_params.append(bo.reshape(1, 1).astype(jnp.float32))   # (1, 1)

    kernel = functools.partial(_sac_q_kernel, n_hidden_layers)

    in_specs = [
        pl.BlockSpec((TB, state_dim), lambda i: (i, 0)),
        pl.BlockSpec((TB, action_dim), lambda i: (i, 0)),
    ]
    for prm in flat_params:
        in_specs.append(_resident_spec(prm.shape))

    out = pl.pallas_call(
        kernel,
        out_shape=jax.ShapeDtypeStruct((Bp, 1), jnp.float32),
        grid=grid,
        in_specs=in_specs,
        out_specs=pl.BlockSpec((TB, 1), lambda i: (i, 0)),
        compiler_params=pltpu.CompilerParams(
            dimension_semantics=("parallel",),  # megacore split on v7x
            vmem_limit_bytes=_vmem_budget_bytes(
                TB, state_dim, action_dim, hidden_dim, flat_params
            ),
        ),
    )(state, action, *flat_params)

    return out[:B]


# ----------------------------------------------------------------------------
# parameter init + references
# ----------------------------------------------------------------------------
def init_params(key, state_dim, action_dim, hidden_dim=256, n_layers=2):
    """Mimics torch.nn.Linear default init: U(-1/sqrt(fan_in), 1/sqrt(fan_in)).
    Weights stored as (in_features, out_features)."""
    dims = [state_dim + action_dim] + [hidden_dim] * n_layers + [1]
    params = []
    for i in range(len(dims) - 1):
        fan_in, fan_out = dims[i], dims[i + 1]
        key, kw, kb = jax.random.split(key, 3)
        bound = 1.0 / math.sqrt(fan_in)
        w = jax.random.uniform(kw, (fan_in, fan_out), jnp.float32, -bound, bound)
        b = jax.random.uniform(kb, (fan_out,), jnp.float32, -bound, bound)
        params.append((w, b))
    return params


def reference_forward_f32(state, action, params):
    """Pure f32 reference of the PyTorch forward pass."""
    x = jnp.concatenate([state, action], axis=1)
    for w, b in params[:-1]:
        x = jnp.maximum(x @ w + b, 0.0)
    w, b = params[-1]
    return x @ w + b


def reference_forward_mixed(state, action, params):
    """Reference matching the kernel's precision choices (bf16 dot inputs,
    f32 accumulation, bf16 activation carry, lane-reduction output)."""
    x = jnp.concatenate([state, action], axis=1).astype(jnp.bfloat16)
    for w, b in params[:-1]:
        y = jnp.dot(x, w.astype(jnp.bfloat16),
                    preferred_element_type=jnp.float32) + b
        x = jnp.maximum(y, 0.0).astype(jnp.bfloat16)
    w, b = params[-1]
    return (jnp.sum(x.astype(jnp.float32) * w.reshape(1, -1), axis=-1,
                    keepdims=True) + b)


if __name__ == "__main__":
    # Small, module-consistent demo shapes.  (Real configs should keep
    # hidden_dim a multiple of 128/256 for MXU tile alignment.)
    batch = 8
    state_dim = 16
    action_dim = 4
    hidden_dim = 32
    n_layers = 2

    key = jax.random.PRNGKey(0)
    k_state, k_action, k_params = jax.random.split(key, 3)

    state = jax.random.normal(k_state, (batch, state_dim), jnp.float32)
    action = jax.random.normal(k_action, (batch, action_dim), jnp.float32)
    params = init_params(k_params, state_dim, action_dim, hidden_dim, n_layers)

    q = sac_q_forward(state, action, params)
    q = jax.block_until_ready(q)
    assert q.shape == (batch, 1), q.shape

    # Tight check vs. a reference using the same mixed precision.
    q_ref_mixed = reference_forward_mixed(state, action, params)
    assert jnp.allclose(q, q_ref_mixed, atol=2e-3, rtol=2e-3), (q, q_ref_mixed)

    # Loose check vs. the pure-f32 PyTorch-equivalent math (bf16 quantization).
    q_ref_f32 = reference_forward_f32(state, action, params)
    assert jnp.allclose(q, q_ref_f32, atol=5e-2, rtol=5e-2), (q, q_ref_f32)

    print("KERNEL_OK")
</pallas_src>

<mosaic_0001>
module attributes {stable_mosaic.version = 11 : i64} {
  func.func @_sac_q_kernel(%arg0: i32, %arg1: memref<16x16xf32, #tpu.memory_space<vmem>>, %arg2: memref<16x4xf32, #tpu.memory_space<vmem>>, %arg3: memref<16x32xbf16, #tpu.memory_space<vmem>>, %arg4: memref<4x32xbf16, #tpu.memory_space<vmem>>, %arg5: memref<1x32xf32, #tpu.memory_space<vmem>>, %arg6: memref<32x32xbf16, #tpu.memory_space<vmem>>, %arg7: memref<1x32xf32, #tpu.memory_space<vmem>>, %arg8: memref<1x32xf32, #tpu.memory_space<vmem>>, %arg9: memref<1x1xf32, #tpu.memory_space<vmem>>, %arg10: memref<16x1xf32, #tpu.memory_space<vmem>>) attributes {dimension_semantics = [#tpu.dimension_semantics<parallel>], iteration_bounds = array<i64: 1>, scalar_prefetch = 0 : i64, scratch_operands = 0 : i64, tpu.core_type = #tpu.core_type<tc>, window_params = [{transform_indices = @transform_0, window_bounds = array<i64: 16, 16>}, {transform_indices = @transform_1, window_bounds = array<i64: 16, 4>}, {pipeline_mode = #tpu.pipeline_mode<synchronous>, transform_indices = @transform_2, window_bounds = array<i64: 16, 32>}, {pipeline_mode = #tpu.pipeline_mode<synchronous>, transform_indices = @transform_3, window_bounds = array<i64: 4, 32>}, {pipeline_mode = #tpu.pipeline_mode<synchronous>, transform_indices = @transform_4, window_bounds = array<i64: 1, 32>}, {pipeline_mode = #tpu.pipeline_mode<synchronous>, transform_indices = @transform_5, window_bounds = array<i64: 32, 32>}, {pipeline_mode = #tpu.pipeline_mode<synchronous>, transform_indices = @transform_6, window_bounds = array<i64: 1, 32>}, {pipeline_mode = #tpu.pipeline_mode<synchronous>, transform_indices = @transform_7, window_bounds = array<i64: 1, 32>}, {pipeline_mode = #tpu.pipeline_mode<synchronous>, transform_indices = @transform_8, window_bounds = array<i64: 1, 1>}, {transform_indices = @transform_9, window_bounds = array<i64: 16, 1>}]} {
    %c0 = arith.constant 0 : index
    %c0_0 = arith.constant 0 : index
    %0 = vector.load %arg1[%c0, %c0_0] : memref<16x16xf32, #tpu.memory_space<vmem>>, vector<16x16xf32>
    %1 = arith.truncf %0 : vector<16x16xf32> to vector<16x16xbf16>
    %c0_1 = arith.constant 0 : index
    %c0_2 = arith.constant 0 : index
    %2 = vector.load %arg2[%c0_1, %c0_2] : memref<16x4xf32, #tpu.memory_space<vmem>>, vector<16x4xf32>
    %3 = arith.truncf %2 : vector<16x4xf32> to vector<16x4xbf16>
    %c0_3 = arith.constant 0 : index
    %c0_4 = arith.constant 0 : index
    %4 = vector.load %arg3[%c0_3, %c0_4] : memref<16x32xbf16, #tpu.memory_space<vmem>>, vector<16x32xbf16>
    %cst = arith.constant dense<0.000000e+00> : vector<16x32xf32>
    %5 = tpu.matmul %1, %4, %cst {dimension_numbers = #tpu.dot_dimension_numbers<[1], [0], [0], [1], [0, 0, 1, 1], [], []>} : vector<16x16xbf16>, vector<16x32xbf16>, vector<16x32xf32> -> vector<16x32xf32>
    %c0_5 = arith.constant 0 : index
    %c0_6 = arith.constant 0 : index
    %6 = vector.load %arg4[%c0_5, %c0_6] : memref<4x32xbf16, #tpu.memory_space<vmem>>, vector<4x32xbf16>
    %cst_7 = arith.constant dense<0.000000e+00> : vector<16x32xf32>
    %7 = tpu.matmul %3, %6, %cst_7 {dimension_numbers = #tpu.dot_dimension_numbers<[1], [0], [0], [1], [0, 0, 1, 1], [], []>} : vector<16x4xbf16>, vector<4x32xbf16>, vector<16x32xf32> -> vector<16x32xf32>
    %8 = arith.addf %5, %7 : vector<16x32xf32>
    %c0_8 = arith.constant 0 : index
    %c0_9 = arith.constant 0 : index
    %9 = vector.load %arg5[%c0_8, %c0_9] : memref<1x32xf32, #tpu.memory_space<vmem>>, vector<1x32xf32>
    %10 = vector.broadcast %9 : vector<1x32xf32> to vector<16x32xf32>
    %11 = arith.addf %8, %10 : vector<16x32xf32>
    %cst_10 = arith.constant 0.000000e+00 : f32
    %12 = vector.broadcast %cst_10 : f32 to vector<16x32xf32>
    %13 = arith.maximumf %11, %12 : vector<16x32xf32>
    %14 = arith.truncf %13 : vector<16x32xf32> to vector<16x32xbf16>
    %c0_11 = arith.constant 0 : index
    %c0_12 = arith.constant 0 : index
    %15 = vector.load %arg6[%c0_11, %c0_12] : memref<32x32xbf16, #tpu.memory_space<vmem>>, vector<32x32xbf16>
    %cst_13 = arith.constant dense<0.000000e+00> : vector<16x32xf32>
    %16 = tpu.matmul %14, %15, %cst_13 {dimension_numbers = #tpu.dot_dimension_numbers<[1], [0], [0], [1], [0, 0, 1, 1], [], []>} : vector<16x32xbf16>, vector<32x32xbf16>, vector<16x32xf32> -> vector<16x32xf32>
    %c0_14 = arith.constant 0 : index
    %c0_15 = arith.constant 0 : index
    %17 = vector.load %arg7[%c0_14, %c0_15] : memref<1x32xf32, #tpu.memory_space<vmem>>, vector<1x32xf32>
    %18 = vector.broadcast %17 : vector<1x32xf32> to vector<16x32xf32>
    %19 = arith.addf %16, %18 : vector<16x32xf32>
    %cst_16 = arith.constant 0.000000e+00 : f32
    %20 = vector.broadcast %cst_16 : f32 to vector<16x32xf32>
    %21 = arith.maximumf %19, %20 : vector<16x32xf32>
    %22 = arith.truncf %21 : vector<16x32xf32> to vector<16x32xbf16>
    %23 = arith.extf %22 : vector<16x32xbf16> to vector<16x32xf32>
    %c0_17 = arith.constant 0 : index
    %c0_18 = arith.constant 0 : index
    %24 = vector.load %arg8[%c0_17, %c0_18] : memref<1x32xf32, #tpu.memory_space<vmem>>, vector<1x32xf32>
    %25 = vector.broadcast %24 : vector<1x32xf32> to vector<16x32xf32>
    %26 = arith.mulf %23, %25 : vector<16x32xf32>
    %cst_19 = arith.constant dense<0.000000e+00> : vector<16xf32>
    %27 = vector.multi_reduction <add>, %26, %cst_19 [1] : vector<16x32xf32> to vector<16xf32>
    %28 = vector.shape_cast %27 : vector<16xf32> to vector<16x1xf32>
    %c0_20 = arith.constant 0 : index
    %c0_21 = arith.constant 0 : index
    %29 = vector.load %arg9[%c0_20, %c0_21] : memref<1x1xf32, #tpu.memory_space<vmem>>, vector<1x1xf32>
    %30 = vector.broadcast %29 : vector<1x1xf32> to vector<16x1xf32>
    %31 = arith.addf %28, %30 : vector<16x1xf32>
    %c0_22 = arith.constant 0 : index
    %c0_23 = arith.constant 0 : index
    %32 = vector.load %arg10[%c0_22, %c0_23] : memref<16x1xf32, #tpu.memory_space<vmem>>, vector<16x1xf32>
    tpu.vector_store %arg10[%c0_22, %c0_23], %31 {strides = array<i32>} : memref<16x1xf32, #tpu.memory_space<vmem>>, vector<16x1xf32>,
    return
  }
  func.func @transform_0(%arg0: i32) -> (i32, i32) {
    %c0_i32 = arith.constant 0 : i32
    %c0_i32_0 = arith.constant 0 : i32
    return %arg0, %c0_i32 : i32, i32
  }
  func.func @transform_1(%arg0: i32) -> (i32, i32) {
    %c0_i32 = arith.constant 0 : i32
    %c0_i32_0 = arith.constant 0 : i32
    return %arg0, %c0_i32 : i32, i32
  }
  func.func @transform_2(%arg0: i32) -> (i32, i32) {
    %c0_i32 = arith.constant 0 : i32
    %c0_i32_0 = arith.constant 0 : i32
    %c0_i32_1 = arith.constant 0 : i32
    return %c0_i32, %c0_i32_0 : i32, i32
  }
  func.func @transform_3(%arg0: i32) -> (i32, i32) {
    %c0_i32 = arith.constant 0 : i32
    %c0_i32_0 = arith.constant 0 : i32
    %c0_i32_1 = arith.constant 0 : i32
    return %c0_i32, %c0_i32_0 : i32, i32
  }
  func.func @transform_4(%arg0: i32) -> (i32, i32) {
    %c0_i32 = arith.constant 0 : i32
    %c0_i32_0 = arith.constant 0 : i32
    %c0_i32_1 = arith.constant 0 : i32
    return %c0_i32, %c0_i32_0 : i32, i32
  }
  func.func @transform_5(%arg0: i32) -> (i32, i32) {
    %c0_i32 = arith.constant 0 : i32
    %c0_i32_0 = arith.constant 0 : i32
    %c0_i32_1 = arith.constant 0 : i32
    return %c0_i32, %c0_i32_0 : i32, i32
  }
  func.func @transform_6(%arg0: i32) -> (i32, i32) {
    %c0_i32 = arith.constant 0 : i32
    %c0_i32_0 = arith.constant 0 : i32
    %c0_i32_1 = arith.constant 0 : i32
    return %c0_i32, %c0_i32_0 : i32, i32
  }
  func.func @transform_7(%arg0: i32) -> (i32, i32) {
    %c0_i32 = arith.constant 0 : i32
    %c0_i32_0 = arith.constant 0 : i32
    %c0_i32_1 = arith.constant 0 : i32
    return %c0_i32, %c0_i32_0 : i32, i32
  }
  func.func @transform_8(%arg0: i32) -> (i32, i32) {
    %c0_i32 = arith.constant 0 : i32
    %c0_i32_0 = arith.constant 0 : i32
    %c0_i32_1 = arith.constant 0 : i32
    return %c0_i32, %c0_i32_0 : i32, i32
  }
  func.func @transform_9(%arg0: i32) -> (i32, i32) {
    %c0_i32 = arith.constant 0 : i32
    %c0_i32_0 = arith.constant 0 : i32
    return %arg0, %c0_i32 : i32, i32
  }
}

</mosaic_0001>

<llo_original>
// kernel: tpu_custom_call.1
$region0: #{tpu_custom_call.1}
  #allocation0 [shape = 'u32[]', space=smem, size = 0x4, offset = 0x4, fixed_abs, tag = 'smem constant byte address 0x4 - core index']
  #allocation1 [shape = 'u32[144,128]{1,0:T(1,128)}', space=vmem, size = 0x12000, scoped, tag = 'internal scratch']
  #allocation2 [shape = 'f32[1,1]{1,0:T(1,128)S(1)}', space=vmem, size = 0x200, scoped, tag = 'scoped memory for tpu_custom_call.1']
  %s0 = inlined_call_operand.vmem [shape: f32[16,16], index: 0, kind: input, shape index: {}]
  %s1 = inlined_call_operand.vmem [shape: f32[16,4], index: 1, kind: input, shape index: {}]
  %s2 = inlined_call_operand.hbm [shape: bf16[16,32], index: 2, kind: input, shape index: {}]
  %s3 = inlined_call_operand.vmem [shape: bf16[4,32], index: 3, kind: input, shape index: {}]
  %s4 = inlined_call_operand.vmem [shape: f32[1,32], index: 4, kind: input, shape index: {}]
  %s5 = inlined_call_operand.vmem [shape: bf16[32,32], index: 5, kind: input, shape index: {}]
  %s6 = inlined_call_operand.vmem [shape: f32[1,32], index: 6, kind: input, shape index: {}]
  %s7 = inlined_call_operand.vmem [shape: f32[1,32], index: 7, kind: input, shape index: {}]
  %s8 = inlined_call_operand.<no memory space> [shape: f32[1,1], index: 8, kind: input, shape index: {}]
  %s9 = inlined_call_operand.vmem [shape: f32[16,1], index: 9, kind: output, shape index: {}]
  %s10 = sld [smem:[#allocation0]]
  $region50: #{tpu_custom_call.1} parent=0
    _
  %s12 = ssub.s32 1, %s10
  %s13 = scalar_select 0, %s12, %s10
  %v14 = vstv %s8
  %15 = vst [vmem:[#allocation2] sm:$0x1] %v14
  $region1: #{tpu_custom_call.1} parent=0
    #allocation3 [shape = 'u8[4096]{0}', space=vmem, size = 0x1000, scoped, tag = 'input window, operand 2, single buffered']
    #allocation4 [shape = 's32[1]{0}', space=sflag, size = 0x4, scoped, tag = 'scoped memory for tpu_custom_call.1']
    %16 = vsyncpa [#allocation4], 0
    // Predicated region
    $region2: #{tpu_custom_call.1} parent=1 // pred_check
      _
    $region3: #{tpu_custom_call.1} parent=1 // pred_check_branch
      %18 = sbr.rel (0) target = $region5
    $region4: #{tpu_custom_call.1} parent=1 // pred_region
      _
    $region5: #{tpu_custom_call.1} parent=1 // pred_fallthru
      _
    // Predicated region
    $region6: #{tpu_custom_call.1} parent=1 // pred_check
      _
    $region7: #{tpu_custom_call.1} parent=1 // pred_check_branch
      %20 = sbr.rel (0) target = $region9
    $region8: #{tpu_custom_call.1} parent=1 // pred_region
      _
    $region9: #{tpu_custom_call.1} parent=1 // pred_fallthru
      _
    // Predicated region
    $region10: #{tpu_custom_call.1} parent=1 // pred_check
      _
    $region11: #{tpu_custom_call.1} parent=1 // pred_check_branch
      %22 = sbr.rel (0) target = $region13
    $region12: #{tpu_custom_call.1} parent=1 // pred_region
      %s24 = ssub.s32 128, 128
      %25 = vsyncadd [#allocation4], %s24
      %s26 = sshll.u32 [#allocation3], 4
      %s27 = int_to_ptr.vmem [resolvable:$true] %s26
      %32 = dma.hbm_to_vmem [thread:$0]  %s2, 128, %s27, [#allocation4], 64, 64, 4
    $region13: #{tpu_custom_call.1} parent=1 // pred_fallthru
      _
    // Predicated region
    $region14: #{tpu_custom_call.1} parent=1 // pred_check
      _
    $region15: #{tpu_custom_call.1} parent=1 // pred_check_branch
      %34 = sbr.rel (0) target = $region17
    $region16: #{tpu_custom_call.1} parent=1 // pred_region
      _
    $region17: #{tpu_custom_call.1} parent=1 // pred_fallthru
      _
    // Predicated region
    $region18: #{tpu_custom_call.1} parent=1 // pred_check
      _
    $region19: #{tpu_custom_call.1} parent=1 // pred_check_branch
      %36 = sbr.rel (0) target = $region21
    $region20: #{tpu_custom_call.1} parent=1 // pred_region
      _
    $region21: #{tpu_custom_call.1} parent=1 // pred_fallthru
      _
    // Predicated region
    $region22: #{tpu_custom_call.1} parent=1 // pred_check
      _
    $region23: #{tpu_custom_call.1} parent=1 // pred_check_branch
      %38 = sbr.rel (0) target = $region25
    $region24: #{tpu_custom_call.1} parent=1 // pred_region
      _
    $region25: #{tpu_custom_call.1} parent=1 // pred_fallthru
      _
    // Predicated region
    $region26: #{tpu_custom_call.1} parent=1 // pred_check
      _
    $region27: #{tpu_custom_call.1} parent=1 // pred_check_branch
      %40 = sbr.rel (0) target = $region29
    $region28: #{tpu_custom_call.1} parent=1 // pred_region
      _
    $region29: #{tpu_custom_call.1} parent=1 // pred_fallthru
      _
    // Predicated region
    $region30: #{tpu_custom_call.1} parent=1 // pred_check
      _
    $region31: #{tpu_custom_call.1} parent=1 // pred_check_branch
      %42 = sbr.rel (0) target = $region33
    $region32: #{tpu_custom_call.1} parent=1 // pred_region
      _
    $region33: #{tpu_custom_call.1} parent=1 // pred_fallthru
      _
    // Predicated region
    $region34: #{tpu_custom_call.1} parent=1 // pred_check
      _
    $region35: #{tpu_custom_call.1} parent=1 // pred_check_branch
      %44 = sbr.rel (0) target = $region37
    $region36: #{tpu_custom_call.1} parent=1 // pred_region
      _
    $region37: #{tpu_custom_call.1} parent=1 // pred_fallthru
      _
    // Predicated region
    $region38: #{tpu_custom_call.1} parent=1 // pred_check
      _
    $region39: #{tpu_custom_call.1} parent=1 // pred_check_branch
      %46 = sbr.rel (0) target = $region41
    $region40: #{tpu_custom_call.1} parent=1 // pred_region
      %47 = dma.done [#allocation4], 128
    $region41: #{tpu_custom_call.1} parent=1 // pred_fallthru
      _
    %v49 = vld [vmem:[%s0] sm:$0xff]
    %v50 = vld [vmem:[%s0 + $0x8] sm:$0xff]
    %v51 = vpack.c.bf16 %v50, %v49
    %v52 = vld [vmem:[%s1] sm:$0xff]
    %v53 = vld [vmem:[%s1 + $0x8] sm:$0xff]
    %v54 = vpack.c.bf16 %v53, %v52
    %v55 = vld [vmem:[#allocation3] sm:$0xf]
    %v56 = vld [vmem:[#allocation3 + $0x4] sm:$0xf]
    %v57 = vld [vmem:[%s3] sm:$0x3]
    %vm58 = vcmask 31744
    %v60 = vsel %vm58, %v54, 0
    %vm62 = vcmask 1041408
    %v64 = vsel %vm62, %v57, 0
    %66 = vmatprep.subr.bf16.mxu0 0
    %67 = vmatpush1.bf16.msra.mxu0 %v64
    %68 = vmatprep.subr.bf16.mxu0 0
    %69 = vmatpush1.bf16.msra.mxu0 0
    %70 = vmatprep.subr.bf16.mxu0 0
    %71 = vmatpush1.bf16.msra.mxu0 0
    %72 = vmatprep.subr.bf16.mxu0 0
    %73 = vmatpush1.bf16.msra.mxu0 0
    %74 = vmatprep.subr.bf16.mxu0 0
    %75 = vmatpush1.bf16.msra.mxu0 0
    %76 = vmatprep.subr.bf16.mxu0 0
    %77 = vmatpush1.bf16.msra.mxu0 0
    %78 = vmatprep.subr.bf16.mxu0 0
    %79 = vmatpush1.bf16.msra.mxu0 0
    %80 = vmatprep.subr.bf16.mxu0 0
    %81 = vmatpush1.bf16.msra.mxu0 0
    %82 = vmatprep.subr.bf16.mxu0 0
    %83 = vmatpush1.bf16.msra.mxu0 0
    %84 = vmatprep.subr.bf16.mxu0 0
    %85 = vmatpush1.bf16.msra.mxu0 0
    %86 = vmatprep.subr.bf16.mxu0 0
    %87 = vmatpush1.bf16.msra.mxu0 0
    %88 = vmatprep.subr.bf16.mxu0 0
    %89 = vmatpush1.bf16.msra.mxu0 0
    %90 = vmatprep.subr.bf16.mxu0 0
    %91 = vmatpush1.bf16.msra.mxu0 0
    %92 = vmatprep.subr.bf16.mxu0 0
    %93 = vmatpush1.bf16.msra.mxu0 0
    %94 = vmatprep.subr.bf16.mxu0 0
    %95 = vmatpush1.bf16.msra.mxu0 0
    %96 = vmatprep.subr.bf16.mxu0 0
    %97 = vmatpush1.bf16.msra.mxu0 0
    %98 = vmatprep.mubr.bf16.mxu0 0
    %99 = vmatmul.mubr.bf16.gmra.mrb[0].mxu0 %v60
    %v100 = vpop.f32.mrb[0].mxu0
    %v101 = vadd.f32 0.0, %v100
    %v102 = vpop.f32.mrb[0].mxu0
    %v103 = vpop.f32.mrb[0].mxu0
    %v104 = vadd.f32 0.0, %v103
    %v105 = vpop.f32.mrb[0].mxu0
    %106 = vdwg.mxu0
    %v109 = vunpack.c.l.b16 %v55
    %v110 = vunpack.c.l.b16 %v56
    %v111 = vpack.c.b16 %v110, %v109
    %vm113 = vcmask 130048
    %v115 = vsel %vm113, %v51, 0
    %117 = vmatprep.subr.bf16.mxu0 0
    %118 = vmatpush1.bf16.msra.mxu0 %v111
    %119 = vmatprep.subr.bf16.mxu0 0
    %120 = vmatpush1.bf16.msra.mxu0 0
    %121 = vmatprep.subr.bf16.mxu0 0
    %122 = vmatpush1.bf16.msra.mxu0 0
    %123 = vmatprep.subr.bf16.mxu0 0
    %124 = vmatpush1.bf16.msra.mxu0 0
    %125 = vmatprep.subr.bf16.mxu0 0
    %126 = vmatpush1.bf16.msra.mxu0 0
    %127 = vmatprep.subr.bf16.mxu0 0
    %128 = vmatpush1.bf16.msra.mxu0 0
    %129 = vmatprep.subr.bf16.mxu0 0
    %130 = vmatpush1.bf16.msra.mxu0 0
    %131 = vmatprep.subr.bf16.mxu0 0
    %132 = vmatpush1.bf16.msra.mxu0 0
    %133 = vmatprep.subr.bf16.mxu0 0
    %134 = vmatpush1.bf16.msra.mxu0 0
    %135 = vmatprep.subr.bf16.mxu0 0
    %136 = vmatpush1.bf16.msra.mxu0 0
    %137 = vmatprep.subr.bf16.mxu0 0
    %138 = vmatpush1.bf16.msra.mxu0 0
    %139 = vmatprep.subr.bf16.mxu0 0
    %140 = vmatpush1.bf16.msra.mxu0 0
    %141 = vmatprep.subr.bf16.mxu0 0
    %142 = vmatpush1.bf16.msra.mxu0 0
    %143 = vmatprep.subr.bf16.mxu0 0
    %144 = vmatpush1.bf16.msra.mxu0 0
    %145 = vmatprep.subr.bf16.mxu0 0
    %146 = vmatpush1.bf16.msra.mxu0 0
    %147 = vmatprep.subr.bf16.mxu0 0
    %148 = vmatpush1.bf16.msra.mxu0 0
    %149 = vmatprep.mubr.bf16.mxu0 0
    %150 = vmatmul.mubr.bf16.gmra.mrb[0].mxu0 %v115
    %v151 = vpop.f32.mrb[0].mxu0
    %v152 = vadd.f32 %v101, %v151
    %v153 = vpop.f32.mrb[0].mxu0
    %v154 = vpop.f32.mrb[0].mxu0
    %v155 = vadd.f32 %v104, %v154
    %v156 = vpop.f32.mrb[0].mxu0
    %157 = vdwg.mxu0
    %v158 = vld [vmem:[%s4] sm:$0x1]
    %v160 = vlaneseq
    %v161 = vshrl.u32 %v160, 7
    %v162 = vsub.s32 0, %v161
    %v163 = vrot.slane %v158, %v162
    %v165 = vadd.f32 %v152, %v163
    %v166 = vadd.f32 %v155, %v163
    %v167 = vmax.f32 %v165, 0.0
    %v168 = vmax.f32 %v166, 0.0
    %v169 = vpack.c.bf16 %v168, %v167
    %v170 = vld [vmem:[%s5] sm:$0xf]
    %v171 = vld [vmem:[%s5 + $0x4] sm:$0xf]
    %v172 = vld [vmem:[%s5 + $0x8] sm:$0xf]
    %v173 = vld [vmem:[%s5 + $0xc] sm:$0xf]
    %v174 = vld [vmem:[%s6] sm:$0x1]
    %v176 = vlaneseq
    %v177 = vshrl.u32 %v176, 7
    %v178 = vsub.s32 0, %v177
    %v179 = vrot.slane %v174, %v178
    %v185 = vunpack.c.l.b16 %v170
    %v186 = vunpack.c.l.b16 %v171
    %v187 = vunpack.c.l.b16 %v172
    %v188 = vunpack.c.l.b16 %v173
    %v189 = vpack.c.b16 %v186, %v185
    %v190 = vpack.c.b16 %v188, %v187
    %vm193 = vcmask 261120
    %v195 = vsel %vm193, %v169, 0
    %197 = vmatprep.subr.bf16.mxu0 0
    %198 = vmatpush1.bf16.msra.mxu0 %v189
    %199 = vmatprep.subr.bf16.mxu0 0
    %200 = vmatpush1.bf16.msra.mxu0 %v190
    %201 = vmatprep.subr.bf16.mxu0 0
    %202 = vmatpush1.bf16.msra.mxu0 0
    %203 = vmatprep.subr.bf16.mxu0 0
    %204 = vmatpush1.bf16.msra.mxu0 0
    %205 = vmatprep.subr.bf16.mxu0 0
    %206 = vmatpush1.bf16.msra.mxu0 0
    %207 = vmatprep.subr.bf16.mxu0 0
    %208 = vmatpush1.bf16.msra.mxu0 0
    %209 = vmatprep.subr.bf16.mxu0 0
    %210 = vmatpush1.bf16.msra.mxu0 0
    %211 = vmatprep.subr.bf16.mxu0 0
    %212 = vmatpush1.bf16.msra.mxu0 0
    %213 = vmatprep.subr.bf16.mxu0 0
    %214 = vmatpush1.bf16.msra.mxu0 0
    %215 = vmatprep.subr.bf16.mxu0 0
    %216 = vmatpush1.bf16.msra.mxu0 0
    %217 = vmatprep.subr.bf16.mxu0 0
    %218 = vmatpush1.bf16.msra.mxu0 0
    %219 = vmatprep.subr.bf16.mxu0 0
    %220 = vmatpush1.bf16.msra.mxu0 0
    %221 = vmatprep.subr.bf16.mxu0 0
    %222 = vmatpush1.bf16.msra.mxu0 0
    %223 = vmatprep.subr.bf16.mxu0 0
    %224 = vmatpush1.bf16.msra.mxu0 0
    %225 = vmatprep.subr.bf16.mxu0 0
    %226 = vmatpush1.bf16.msra.mxu0 0
    %227 = vmatprep.subr.bf16.mxu0 0
    %228 = vmatpush1.bf16.msra.mxu0 0
    %229 = vmatprep.mubr.bf16.mxu0 0
    %230 = vmatmul.mubr.bf16.gmra.mrb[0].mxu0 %v195
    %v231 = vpop.f32.mrb[0].mxu0
    %v232 = vadd.f32 %v179, %v231
    %v233 = vpop.f32.mrb[0].mxu0
    %v234 = vpop.f32.mrb[0].mxu0
    %v235 = vadd.f32 %v179, %v234
    %v236 = vpop.f32.mrb[0].mxu0
    %237 = vdwg.mxu0
    %v238 = vmax.f32 %v232, 0.0
    %v239 = vmax.f32 %v235, 0.0
    %v240 = vpack.c.bf16 %v239, %v238
    %v241 = vunpack.c.l.bf16 %v240
    %v242 = vunpack.c.h.bf16 %v240
    %v243 = vld [vmem:[%s7] sm:$0x1]
    %v245 = vlaneseq
    %v246 = vshrl.u32 %v245, 7
    %v247 = vsub.s32 0, %v246
    %v248 = vrot.slane %v243, %v247
    %v250 = vmul.f32 %v241, %v248
    %v251 = vmul.f32 %v242, %v248
    %v252 = vsel %vm193, %v250, 0.0
    %253 = vadd.xlane.f32.xlu0 %v252
    %v254 = vpop.xlane.xlu0 %253
    %v255 = vsel %vm193, %v251, 0.0
    %256 = vadd.xlane.f32.xlu0 %v255
    %v257 = vpop.xlane.xlu0 %256
    %v258 = vld [vmem:[#allocation2] sm:$0x1]
    %v260 = vlaneseq
    %v261 = vshrl.u32 %v260, 7
    %v262 = vsub.s32 0, %v261
    %v263 = vrot.slane %v258, %v262
    %v265 = vadd.f32 %v254, %v263
    %v266 = vadd.f32 %v257, %v263
    %vm267 = vcmask 7168
    %268 = vst.msk [vmem:[%s9] sm:$0xff] %vm267, %v265
    %269 = vst.msk [vmem:[%s9 + $0x8] sm:$0xff] %vm267, %v266
    // Predicated region
    $region42: #{tpu_custom_call.1} parent=1 // pred_check
      _
    $region43: #{tpu_custom_call.1} parent=1 // pred_check_branch
      %271 = sbr.rel (0) target = $region45
    $region44: #{tpu_custom_call.1} parent=1 // pred_region
      _
    $region45: #{tpu_custom_call.1} parent=1 // pred_fallthru
      _
    // Predicated region
    $region46: #{tpu_custom_call.1} parent=1 // pred_check
      _
    $region47: #{tpu_custom_call.1} parent=1 // pred_check_branch
      %273 = sbr.rel (0) target = $region49
    $region48: #{tpu_custom_call.1} parent=1 // pred_region
      _
    $region49: #{tpu_custom_call.1} parent=1 // pred_fallthru
      _
    %274 = vsyncpa [#allocation4], 1

</llo_original>
